<compile_context>
chip_gen: v7x
topology: tpu7x:2x2x1
jax: 0.10.0
libtpu: 0.0.40
codegen_flags: <defaults>
</compile_context>

<pallas_src>
import jax
import jax.numpy as jnp
from jax.experimental import pallas as pl
from jax.experimental.pallas import tpu as pltpu


def _round_up(n, m):
    return ((n + m - 1) // m) * m


def _make_kernel(num_layers):
    """Kernel args: xi_ref, xj_ref, (w0, b0, ..., w_{L-1}, b_{L-1}), out_ref."""

    def kernel(*refs):
        xi_ref, xj_ref = refs[0], refs[1]
        out_ref = refs[-1]
        layer_refs = refs[2:-1]

        # Element-wise product of the two endpoint embeddings, in f32 on the
        # VPU (works on every TPU generation regardless of input dtype).
        h = xi_ref[...].astype(jnp.float32) * xj_ref[...].astype(jnp.float32)

        for l in range(num_layers):
            w_ref = layer_refs[2 * l]
            b_ref = layer_refs[2 * l + 1]
            # Cast activation to the weight dtype (bf16 MXU fast path when
            # compute_dtype=bf16); accumulate in f32.
            h = jnp.dot(h.astype(w_ref.dtype), w_ref[...],
                        preferred_element_type=jnp.float32) + b_ref[...]
            if l < num_layers - 1:
                h = jnp.maximum(h, 0.0)
                # TODO(synk): training-mode dropout would go here
                #             (pltpu.prng_seed + pltpu.prng_random_bits mask).

        out_ref[...] = jax.nn.sigmoid(h).astype(out_ref.dtype)

    return kernel


def link_predictor(x_i, x_j, params, *, block_rows=2048,
                   compute_dtype=jnp.float32):
    """params = [(W0, b0), ..., (W_{L-1}, b_{L-1})], W_k shaped (fan_in, fan_out).

    block_rows: rows per batch tile.  1024-2048 gets ~85%+ of the HBM roofline;
    with in_channels=32 f32 even 2048 rows is only ~256 KiB per input tile
    (x2 inputs x2 pipeline buffers ~= 1 MiB), far inside every generation's
    scoped-VMEM budget.
    """
    B, C = x_i.shape
    out_channels = params[-1][0].shape[1]
    num_layers = len(params)

    # Tile rows: multiple of 8 sublanes, no larger than the (rounded-up) batch.
    TB = max(8, min(_round_up(block_rows, 8), _round_up(B, 8)))
    grid = (pl.cdiv(B, TB),)   # ragged edge handled by Pallas masked block I/O

    # x_i / x_j tile along the batch; weights & biases use a constant index_map
    # so they are DMA'd once and stay resident in VMEM across all grid steps.
    in_specs = [pl.BlockSpec((TB, C), lambda i: (i, 0)),
                pl.BlockSpec((TB, C), lambda i: (i, 0))]
    flat_wb = []
    for w, b in params:
        w = w.astype(compute_dtype)                 # tiny; cast is negligible
        b = b.reshape(1, -1).astype(jnp.float32)    # bias add stays in f32
        flat_wb += [w, b]
        in_specs += [pl.BlockSpec(w.shape, lambda i: (0, 0)),
                     pl.BlockSpec(b.shape, lambda i: (0, 0))]

    return pl.pallas_call(
        _make_kernel(num_layers),
        out_shape=jax.ShapeDtypeStruct((B, out_channels), jnp.float32),
        grid_spec=pltpu.PrefetchScalarGridSpec(
            num_scalar_prefetch=0,
            grid=grid,
            in_specs=in_specs,
            # Output is lane-sparse ((TB, 1)) but only 4 B/row vs ~C*4 B/row of
            # reads, so the masked store is negligible -- do not pad it.
            out_specs=pl.BlockSpec((TB, out_channels), lambda i: (i, 0)),
        ),
        compiler_params=pltpu.CompilerParams(
            # Batch tiles are independent -> shard across TCs (v7x megacore).
            dimension_semantics=("parallel",),
        ),
    )(x_i, x_j, *flat_wb)


def init_params(key, in_channels, hidden_channels, out_channels, num_layers):
    """Deterministic init mimicking torch.nn.Linear default (U(+-1/sqrt(fan_in))).
    Weights returned as (fan_in, fan_out) for the x @ W convention."""
    dims = [in_channels] + [hidden_channels] * (num_layers - 1) + [out_channels]
    params = []
    for i in range(num_layers):
        fan_in, fan_out = dims[i], dims[i + 1]
        key, kw, kb = jax.random.split(key, 3)
        bound = 1.0 / jnp.sqrt(fan_in)
        w = jax.random.uniform(kw, (fan_in, fan_out), jnp.float32, -bound, bound)
        b = jax.random.uniform(kb, (fan_out,), jnp.float32, -bound, bound)
        params.append((w, b))
    return params


def reference_forward(x_i, x_j, params):
    x = x_i * x_j
    for w, b in params[:-1]:
        x = jnp.maximum(x @ w + b, 0.0)
    w, b = params[-1]
    return jax.nn.sigmoid(x @ w + b)


if __name__ == "__main__":
    in_channels = 32
    hidden_channels = 32
    out_channels = 1
    num_layers = 3
    dropout = 0.1  # inactive in eval mode

    key = jax.random.PRNGKey(0)
    k_params, k_xi, k_xj, k_xi2, k_xj2 = jax.random.split(key, 5)
    params = init_params(k_params, in_channels, hidden_channels,
                         out_channels, num_layers)

    # --- small batch, f32 compute: exact-path check -------------------------
    B = 8
    x_i = jax.random.normal(k_xi, (B, in_channels), jnp.float32)
    x_j = jax.random.normal(k_xj, (B, in_channels), jnp.float32)

    out = link_predictor(x_i, x_j, params, compute_dtype=jnp.float32)
    out = jax.block_until_ready(out)
    ref = reference_forward(x_i, x_j, params)
    assert out.shape == (B, out_channels)
    assert jnp.allclose(out, ref, atol=1e-5, rtol=1e-5), "f32 mismatch vs reference"

    # --- larger ragged batch (not a multiple of the tile), bf16 matmul path:
    #     exercises masked edge-block handling + mixed precision -------------
    B2 = 1000
    x_i2 = jax.random.normal(k_xi2, (B2, in_channels), jnp.float32)
    x_j2 = jax.random.normal(k_xj2, (B2, in_channels), jnp.float32)

    out2 = link_predictor(x_i2, x_j2, params, block_rows=256,
                          compute_dtype=jnp.bfloat16)
    out2 = jax.block_until_ready(out2)
    ref2 = reference_forward(x_i2, x_j2, params)
    assert out2.shape == (B2, out_channels)
    assert jnp.allclose(out2, ref2, atol=2e-2, rtol=2e-2), "bf16 mismatch vs reference"

    print("KERNEL_OK")
</pallas_src>

<mosaic_0001>
module attributes {stable_mosaic.version = 11 : i64} {
  func.func @kernel(%arg0: i32, %arg1: memref<8x32xf32, #tpu.memory_space<vmem>>, %arg2: memref<8x32xf32, #tpu.memory_space<vmem>>, %arg3: memref<32x32xf32, #tpu.memory_space<vmem>>, %arg4: memref<1x32xf32, #tpu.memory_space<vmem>>, %arg5: memref<32x32xf32, #tpu.memory_space<vmem>>, %arg6: memref<1x32xf32, #tpu.memory_space<vmem>>, %arg7: memref<32x1xf32, #tpu.memory_space<vmem>>, %arg8: memref<1x1xf32, #tpu.memory_space<vmem>>, %arg9: memref<8x1xf32, #tpu.memory_space<vmem>>) attributes {dimension_semantics = [#tpu.dimension_semantics<parallel>], iteration_bounds = array<i64: 1>, scalar_prefetch = 0 : i64, scratch_operands = 0 : i64, tpu.core_type = #tpu.core_type<tc>, window_params = [{transform_indices = @transform_0, window_bounds = array<i64: 8, 32>}, {transform_indices = @transform_1, window_bounds = array<i64: 8, 32>}, {pipeline_mode = #tpu.pipeline_mode<synchronous>, transform_indices = @transform_2, window_bounds = array<i64: 32, 32>}, {pipeline_mode = #tpu.pipeline_mode<synchronous>, transform_indices = @transform_3, window_bounds = array<i64: 1, 32>}, {pipeline_mode = #tpu.pipeline_mode<synchronous>, transform_indices = @transform_4, window_bounds = array<i64: 32, 32>}, {pipeline_mode = #tpu.pipeline_mode<synchronous>, transform_indices = @transform_5, window_bounds = array<i64: 1, 32>}, {pipeline_mode = #tpu.pipeline_mode<synchronous>, transform_indices = @transform_6, window_bounds = array<i64: 32, 1>}, {pipeline_mode = #tpu.pipeline_mode<synchronous>, transform_indices = @transform_7, window_bounds = array<i64: 1, 1>}, {transform_indices = @transform_8, window_bounds = array<i64: 8, 1>}]} {
    %c0 = arith.constant 0 : index
    %c0_0 = arith.constant 0 : index
    %0 = vector.load %arg1[%c0, %c0_0] : memref<8x32xf32, #tpu.memory_space<vmem>>, vector<8x32xf32>
    %c0_1 = arith.constant 0 : index
    %c0_2 = arith.constant 0 : index
    %1 = vector.load %arg2[%c0_1, %c0_2] : memref<8x32xf32, #tpu.memory_space<vmem>>, vector<8x32xf32>
    %2 = arith.mulf %0, %1 : vector<8x32xf32>
    %c0_3 = arith.constant 0 : index
    %c0_4 = arith.constant 0 : index
    %3 = vector.load %arg3[%c0_3, %c0_4] : memref<32x32xf32, #tpu.memory_space<vmem>>, vector<32x32xf32>
    %cst = arith.constant dense<0.000000e+00> : vector<8x32xf32>
    %4 = tpu.matmul %2, %3, %cst {dimension_numbers = #tpu.dot_dimension_numbers<[1], [0], [0], [1], [0, 0, 1, 1], [], []>} : vector<8x32xf32>, vector<32x32xf32>, vector<8x32xf32> -> vector<8x32xf32>
    %c0_5 = arith.constant 0 : index
    %c0_6 = arith.constant 0 : index
    %5 = vector.load %arg4[%c0_5, %c0_6] : memref<1x32xf32, #tpu.memory_space<vmem>>, vector<1x32xf32>
    %6 = vector.broadcast %5 : vector<1x32xf32> to vector<8x32xf32>
    %7 = arith.addf %4, %6 : vector<8x32xf32>
    %cst_7 = arith.constant 0.000000e+00 : f32
    %8 = vector.broadcast %cst_7 : f32 to vector<8x32xf32>
    %9 = arith.maximumf %7, %8 : vector<8x32xf32>
    %c0_8 = arith.constant 0 : index
    %c0_9 = arith.constant 0 : index
    %10 = vector.load %arg5[%c0_8, %c0_9] : memref<32x32xf32, #tpu.memory_space<vmem>>, vector<32x32xf32>
    %cst_10 = arith.constant dense<0.000000e+00> : vector<8x32xf32>
    %11 = tpu.matmul %9, %10, %cst_10 {dimension_numbers = #tpu.dot_dimension_numbers<[1], [0], [0], [1], [0, 0, 1, 1], [], []>} : vector<8x32xf32>, vector<32x32xf32>, vector<8x32xf32> -> vector<8x32xf32>
    %c0_11 = arith.constant 0 : index
    %c0_12 = arith.constant 0 : index
    %12 = vector.load %arg6[%c0_11, %c0_12] : memref<1x32xf32, #tpu.memory_space<vmem>>, vector<1x32xf32>
    %13 = vector.broadcast %12 : vector<1x32xf32> to vector<8x32xf32>
    %14 = arith.addf %11, %13 : vector<8x32xf32>
    %cst_13 = arith.constant 0.000000e+00 : f32
    %15 = vector.broadcast %cst_13 : f32 to vector<8x32xf32>
    %16 = arith.maximumf %14, %15 : vector<8x32xf32>
    %c0_14 = arith.constant 0 : index
    %c0_15 = arith.constant 0 : index
    %17 = vector.load %arg7[%c0_14, %c0_15] : memref<32x1xf32, #tpu.memory_space<vmem>>, vector<32x1xf32>
    %cst_16 = arith.constant dense<0.000000e+00> : vector<8x1xf32>
    %18 = tpu.matmul %16, %17, %cst_16 {dimension_numbers = #tpu.dot_dimension_numbers<[1], [0], [0], [1], [0, 0, 1, 1], [], []>} : vector<8x32xf32>, vector<32x1xf32>, vector<8x1xf32> -> vector<8x1xf32>
    %c0_17 = arith.constant 0 : index
    %c0_18 = arith.constant 0 : index
    %19 = vector.load %arg8[%c0_17, %c0_18] : memref<1x1xf32, #tpu.memory_space<vmem>>, vector<1x1xf32>
    %20 = vector.broadcast %19 : vector<1x1xf32> to vector<8x1xf32>
    %21 = arith.addf %18, %20 : vector<8x1xf32>
    %22 = arith.negf %21 : vector<8x1xf32>
    %23 = math.exp %22 : vector<8x1xf32>
    %cst_19 = arith.constant 1.000000e+00 : f32
    %24 = vector.broadcast %cst_19 : f32 to vector<8x1xf32>
    %25 = arith.addf %24, %23 : vector<8x1xf32>
    %26 = arith.divf %24, %25 : vector<8x1xf32>
    %c0_20 = arith.constant 0 : index
    %c0_21 = arith.constant 0 : index
    %27 = vector.load %arg9[%c0_20, %c0_21] : memref<8x1xf32, #tpu.memory_space<vmem>>, vector<8x1xf32>
    tpu.vector_store %arg9[%c0_20, %c0_21], %26 {strides = array<i32>} : memref<8x1xf32, #tpu.memory_space<vmem>>, vector<8x1xf32>,
    return
  }
  func.func @transform_0(%arg0: i32) -> (i32, i32) {
    %c0_i32 = arith.constant 0 : i32
    %c0_i32_0 = arith.constant 0 : i32
    return %arg0, %c0_i32 : i32, i32
  }
  func.func @transform_1(%arg0: i32) -> (i32, i32) {
    %c0_i32 = arith.constant 0 : i32
    %c0_i32_0 = arith.constant 0 : i32
    return %arg0, %c0_i32 : i32, i32
  }
  func.func @transform_2(%arg0: i32) -> (i32, i32) {
    %c0_i32 = arith.constant 0 : i32
    %c0_i32_0 = arith.constant 0 : i32
    %c0_i32_1 = arith.constant 0 : i32
    return %c0_i32, %c0_i32_0 : i32, i32
  }
  func.func @transform_3(%arg0: i32) -> (i32, i32) {
    %c0_i32 = arith.constant 0 : i32
    %c0_i32_0 = arith.constant 0 : i32
    %c0_i32_1 = arith.constant 0 : i32
    return %c0_i32, %c0_i32_0 : i32, i32
  }
  func.func @transform_4(%arg0: i32) -> (i32, i32) {
    %c0_i32 = arith.constant 0 : i32
    %c0_i32_0 = arith.constant 0 : i32
    %c0_i32_1 = arith.constant 0 : i32
    return %c0_i32, %c0_i32_0 : i32, i32
  }
  func.func @transform_5(%arg0: i32) -> (i32, i32) {
    %c0_i32 = arith.constant 0 : i32
    %c0_i32_0 = arith.constant 0 : i32
    %c0_i32_1 = arith.constant 0 : i32
    return %c0_i32, %c0_i32_0 : i32, i32
  }
  func.func @transform_6(%arg0: i32) -> (i32, i32) {
    %c0_i32 = arith.constant 0 : i32
    %c0_i32_0 = arith.constant 0 : i32
    %c0_i32_1 = arith.constant 0 : i32
    return %c0_i32, %c0_i32_0 : i32, i32
  }
  func.func @transform_7(%arg0: i32) -> (i32, i32) {
    %c0_i32 = arith.constant 0 : i32
    %c0_i32_0 = arith.constant 0 : i32
    %c0_i32_1 = arith.constant 0 : i32
    return %c0_i32, %c0_i32_0 : i32, i32
  }
  func.func @transform_8(%arg0: i32) -> (i32, i32) {
    %c0_i32 = arith.constant 0 : i32
    %c0_i32_0 = arith.constant 0 : i32
    return %arg0, %c0_i32 : i32, i32
  }
}

</mosaic_0001>

<llo_original>
// kernel: tpu_custom_call.1
$region0: #{tpu_custom_call.1}
  #allocation0 [shape = 'u32[]', space=smem, size = 0x4, offset = 0x4, fixed_abs, tag = 'smem constant byte address 0x4 - core index']
  #allocation1 [shape = 'u32[144,128]{1,0:T(1,128)}', space=vmem, size = 0x12000, scoped, tag = 'internal scratch']
  #allocation2 [shape = 'f32[1,1]{1,0:T(1,128)S(1)}', space=vmem, size = 0x200, scoped, tag = 'scoped memory for tpu_custom_call.1']
  %s0 = inlined_call_operand.vmem [shape: f32[8,32], index: 0, kind: input, shape index: {}]
  %s1 = inlined_call_operand.hbm [shape: f32[8,32], index: 1, kind: input, shape index: {}]
  %s2 = inlined_call_operand.vmem [shape: f32[32,32], index: 2, kind: input, shape index: {}]
  %s3 = inlined_call_operand.vmem [shape: f32[1,32], index: 3, kind: input, shape index: {}]
  %s4 = inlined_call_operand.hbm [shape: f32[32,32], index: 4, kind: input, shape index: {}]
  %s5 = inlined_call_operand.vmem [shape: f32[1,32], index: 5, kind: input, shape index: {}]
  %s6 = inlined_call_operand.vmem [shape: f32[32,1], index: 6, kind: input, shape index: {}]
  %s7 = inlined_call_operand.<no memory space> [shape: f32[1,1], index: 7, kind: input, shape index: {}]
  %s8 = inlined_call_operand.vmem [shape: f32[8,1], index: 8, kind: output, shape index: {}]
  %s9 = sld [smem:[#allocation0]]
  $region50: #{tpu_custom_call.1} parent=0
    _
  %s11 = ssub.s32 1, %s9
  %s12 = scalar_select 0, %s11, %s9
  %v13 = vstv %s7
  %14 = vst [vmem:[#allocation2] sm:$0x1] %v13
  $region1: #{tpu_custom_call.1} parent=0
    #allocation3 [shape = 'u8[4096]{0}', space=vmem, size = 0x1000, scoped, tag = 'input window, operand 1, single buffered']
    #allocation4 [shape = 's32[1]{0}', space=sflag, size = 0x4, scoped, tag = 'scoped memory for tpu_custom_call.1']
    #allocation5 [shape = 'u8[16384]{0}', space=vmem, size = 0x4000, scoped, tag = 'input window, operand 4, single buffered']
    #allocation6 [shape = 's32[1]{0}', space=sflag, size = 0x4, scoped, tag = 'scoped memory for tpu_custom_call.1']
    %15 = vsyncpa [#allocation4], 0
    %16 = vsyncpa [#allocation6], 0
    // Predicated region
    $region2: #{tpu_custom_call.1} parent=1 // pred_check
      _
    $region3: #{tpu_custom_call.1} parent=1 // pred_check_branch
      %18 = sbr.rel (0) target = $region5
    $region4: #{tpu_custom_call.1} parent=1 // pred_region
      _
    $region5: #{tpu_custom_call.1} parent=1 // pred_fallthru
      _
    // Predicated region
    $region6: #{tpu_custom_call.1} parent=1 // pred_check
      _
    $region7: #{tpu_custom_call.1} parent=1 // pred_check_branch
      %20 = sbr.rel (0) target = $region9
    $region8: #{tpu_custom_call.1} parent=1 // pred_region
      %s22 = ssub.s32 128, 128
      %23 = vsyncadd [#allocation4], %s22
      %s25 = sshll.u32 [#allocation3], 4
      %s26 = int_to_ptr.vmem [resolvable:$true] %s25
      %28 = dma.hbm_to_vmem [thread:$0]  %s1, 128, %s26, [#allocation4]
    $region9: #{tpu_custom_call.1} parent=1 // pred_fallthru
      _
    // Predicated region
    $region10: #{tpu_custom_call.1} parent=1 // pred_check
      _
    $region11: #{tpu_custom_call.1} parent=1 // pred_check_branch
      %30 = sbr.rel (0) target = $region13
    $region12: #{tpu_custom_call.1} parent=1 // pred_region
      _
    $region13: #{tpu_custom_call.1} parent=1 // pred_fallthru
      _
    // Predicated region
    $region14: #{tpu_custom_call.1} parent=1 // pred_check
      _
    $region15: #{tpu_custom_call.1} parent=1 // pred_check_branch
      %32 = sbr.rel (0) target = $region17
    $region16: #{tpu_custom_call.1} parent=1 // pred_region
      _
    $region17: #{tpu_custom_call.1} parent=1 // pred_fallthru
      _
    // Predicated region
    $region18: #{tpu_custom_call.1} parent=1 // pred_check
      _
    $region19: #{tpu_custom_call.1} parent=1 // pred_check_branch
      %34 = sbr.rel (0) target = $region21
    $region20: #{tpu_custom_call.1} parent=1 // pred_region
      %s36 = ssub.s32 512, 512
      %37 = vsyncadd [#allocation6], %s36
      %s38 = sshll.u32 [#allocation5], 4
      %s39 = int_to_ptr.vmem [resolvable:$true] %s38
      %44 = dma.hbm_to_vmem [thread:$0]  %s4, 512, %s39, [#allocation6], 128, 128, 8
    $region21: #{tpu_custom_call.1} parent=1 // pred_fallthru
      _
    // Predicated region
    $region22: #{tpu_custom_call.1} parent=1 // pred_check
      _
    $region23: #{tpu_custom_call.1} parent=1 // pred_check_branch
      %46 = sbr.rel (0) target = $region25
    $region24: #{tpu_custom_call.1} parent=1 // pred_region
      _
    $region25: #{tpu_custom_call.1} parent=1 // pred_fallthru
      _
    // Predicated region
    $region26: #{tpu_custom_call.1} parent=1 // pred_check
      _
    $region27: #{tpu_custom_call.1} parent=1 // pred_check_branch
      %48 = sbr.rel (0) target = $region29
    $region28: #{tpu_custom_call.1} parent=1 // pred_region
      _
    $region29: #{tpu_custom_call.1} parent=1 // pred_fallthru
      _
    // Predicated region
    $region30: #{tpu_custom_call.1} parent=1 // pred_check
      _
    $region31: #{tpu_custom_call.1} parent=1 // pred_check_branch
      %50 = sbr.rel (0) target = $region33
    $region32: #{tpu_custom_call.1} parent=1 // pred_region
      _
    $region33: #{tpu_custom_call.1} parent=1 // pred_fallthru
      _
    // Predicated region
    $region34: #{tpu_custom_call.1} parent=1 // pred_check
      _
    $region35: #{tpu_custom_call.1} parent=1 // pred_check_branch
      %52 = sbr.rel (0) target = $region37
    $region36: #{tpu_custom_call.1} parent=1 // pred_region
      %53 = dma.done [#allocation4], 128
    $region37: #{tpu_custom_call.1} parent=1 // pred_fallthru
      _
    // Predicated region
    $region38: #{tpu_custom_call.1} parent=1 // pred_check
      _
    $region39: #{tpu_custom_call.1} parent=1 // pred_check_branch
      %55 = sbr.rel (0) target = $region41
    $region40: #{tpu_custom_call.1} parent=1 // pred_region
      %56 = dma.done [#allocation6], 512
    $region41: #{tpu_custom_call.1} parent=1 // pred_fallthru
      _
    %v57 = vld [vmem:[%s0] sm:$0xff]
    %v58 = vld [vmem:[#allocation3] sm:$0xff]
    %v59 = vmul.f32 %v57, %v58
    %v60 = vld [vmem:[%s2] sm:$0xff]
    %v61 = vld [vmem:[%s2 + $0x8] sm:$0xff]
    %v62 = vld [vmem:[%s2 + $0x10] sm:$0xff]
    %v63 = vld [vmem:[%s2 + $0x18] sm:$0xff]
    %v64 = vld [vmem:[%s3] sm:$0x1]
    %v66 = vlaneseq
    %v67 = vshrl.u32 %v66, 7
    %v68 = vsub.s32 0, %v67
    %v69 = vrot.slane %v64, %v68
    %vm71 = vcmask 261120
    %v73 = vsel %vm71, %v59, 0
    %75 = vmatprep.subr.mxu0 0.0
    %76 = vmatpush1.msra.mxu0 %v60
    %77 = vmatprep.subr.mxu0 0.0
    %78 = vmatpush1.msra.mxu0 %v61
    %79 = vmatprep.subr.mxu0 0.0
    %80 = vmatpush1.msra.mxu0 %v62
    %81 = vmatprep.subr.mxu0 0.0
    %82 = vmatpush1.msra.mxu0 %v63
    %83 = vmatprep.subr.mxu0 0.0
    %84 = vmatpush1.msra.mxu0 0.0
    %85 = vmatprep.subr.mxu0 0.0
    %86 = vmatpush1.msra.mxu0 0.0
    %87 = vmatprep.subr.mxu0 0.0
    %88 = vmatpush1.msra.mxu0 0.0
    %89 = vmatprep.subr.mxu0 0.0
    %90 = vmatpush1.msra.mxu0 0.0
    %91 = vmatprep.subr.mxu0 0.0
    %92 = vmatpush1.msra.mxu0 0.0
    %93 = vmatprep.subr.mxu0 0.0
    %94 = vmatpush1.msra.mxu0 0.0
    %95 = vmatprep.subr.mxu0 0.0
    %96 = vmatpush1.msra.mxu0 0.0
    %97 = vmatprep.subr.mxu0 0.0
    %98 = vmatpush1.msra.mxu0 0.0
    %99 = vmatprep.subr.mxu0 0.0
    %100 = vmatpush1.msra.mxu0 0.0
    %101 = vmatprep.subr.mxu0 0.0
    %102 = vmatpush1.msra.mxu0 0.0
    %103 = vmatprep.subr.mxu0 0.0
    %104 = vmatpush1.msra.mxu0 0.0
    %105 = vmatprep.subr.mxu0 0.0
    %106 = vmatpush1.msra.mxu0 0.0
    %107 = vmatprep.subr.mxu0 0.0
    %108 = vmatpush1.msra.mxu0 0.0
    %109 = vmatprep.subr.mxu0 0.0
    %110 = vmatpush1.msra.mxu0 0.0
    %111 = vmatprep.subr.mxu0 0.0
    %112 = vmatpush1.msra.mxu0 0.0
    %113 = vmatprep.subr.mxu0 0.0
    %114 = vmatpush1.msra.mxu0 0.0
    %115 = vmatprep.subr.mxu0 0.0
    %116 = vmatpush1.msra.mxu0 0.0
    %117 = vmatprep.subr.mxu0 0.0
    %118 = vmatpush1.msra.mxu0 0.0
    %119 = vmatprep.subr.mxu0 0.0
    %120 = vmatpush1.msra.mxu0 0.0
    %121 = vmatprep.subr.mxu0 0.0
    %122 = vmatpush1.msra.mxu0 0.0
    %123 = vmatprep.subr.mxu0 0.0
    %124 = vmatpush1.msra.mxu0 0.0
    %125 = vmatprep.subr.mxu0 0.0
    %126 = vmatpush1.msra.mxu0 0.0
    %127 = vmatprep.subr.mxu0 0.0
    %128 = vmatpush1.msra.mxu0 0.0
    %129 = vmatprep.subr.mxu0 0.0
    %130 = vmatpush1.msra.mxu0 0.0
    %131 = vmatprep.subr.mxu0 0.0
    %132 = vmatpush1.msra.mxu0 0.0
    %133 = vmatprep.subr.mxu0 0.0
    %134 = vmatpush1.msra.mxu0 0.0
    %135 = vmatprep.subr.mxu0 0.0
    %136 = vmatpush1.msra.mxu0 0.0
    %137 = vmatprep.subr.mxu0 0.0
    %138 = vmatpush1.msra.mxu0 0.0
    %139 = vmatprep.mubr.f32.mxu0 0.0
    %140 = vmatmul.mubr.f32.gmra.mrb[0].mxu0 %v73
    %v141 = vpop.f32.mrb[0].mxu0
    %v142 = vadd.f32 %v69, %v141
    %v143 = vpop.f32.mrb[0].mxu0
    %144 = vdwg.mxu0
    %v145 = vmax.f32 %v142, 0.0
    %v146 = vld [vmem:[#allocation5] sm:$0xff]
    %v147 = vld [vmem:[#allocation5 + $0x8] sm:$0xff]
    %v148 = vld [vmem:[#allocation5 + $0x10] sm:$0xff]
    %v149 = vld [vmem:[#allocation5 + $0x18] sm:$0xff]
    %v150 = vld [vmem:[%s5] sm:$0x1]
    %v152 = vlaneseq
    %v153 = vshrl.u32 %v152, 7
    %v154 = vsub.s32 0, %v153
    %v155 = vrot.slane %v150, %v154
    %v158 = vsel %vm71, %v145, 0
    %160 = vmatprep.subr.mxu0 0.0
    %161 = vmatpush1.msra.mxu0 %v146
    %162 = vmatprep.subr.mxu0 0.0
    %163 = vmatpush1.msra.mxu0 %v147
    %164 = vmatprep.subr.mxu0 0.0
    %165 = vmatpush1.msra.mxu0 %v148
    %166 = vmatprep.subr.mxu0 0.0
    %167 = vmatpush1.msra.mxu0 %v149
    %168 = vmatprep.subr.mxu0 0.0
    %169 = vmatpush1.msra.mxu0 0.0
    %170 = vmatprep.subr.mxu0 0.0
    %171 = vmatpush1.msra.mxu0 0.0
    %172 = vmatprep.subr.mxu0 0.0
    %173 = vmatpush1.msra.mxu0 0.0
    %174 = vmatprep.subr.mxu0 0.0
    %175 = vmatpush1.msra.mxu0 0.0
    %176 = vmatprep.subr.mxu0 0.0
    %177 = vmatpush1.msra.mxu0 0.0
    %178 = vmatprep.subr.mxu0 0.0
    %179 = vmatpush1.msra.mxu0 0.0
    %180 = vmatprep.subr.mxu0 0.0
    %181 = vmatpush1.msra.mxu0 0.0
    %182 = vmatprep.subr.mxu0 0.0
    %183 = vmatpush1.msra.mxu0 0.0
    %184 = vmatprep.subr.mxu0 0.0
    %185 = vmatpush1.msra.mxu0 0.0
    %186 = vmatprep.subr.mxu0 0.0
    %187 = vmatpush1.msra.mxu0 0.0
    %188 = vmatprep.subr.mxu0 0.0
    %189 = vmatpush1.msra.mxu0 0.0
    %190 = vmatprep.subr.mxu0 0.0
    %191 = vmatpush1.msra.mxu0 0.0
    %192 = vmatprep.subr.mxu0 0.0
    %193 = vmatpush1.msra.mxu0 0.0
    %194 = vmatprep.subr.mxu0 0.0
    %195 = vmatpush1.msra.mxu0 0.0
    %196 = vmatprep.subr.mxu0 0.0
    %197 = vmatpush1.msra.mxu0 0.0
    %198 = vmatprep.subr.mxu0 0.0
    %199 = vmatpush1.msra.mxu0 0.0
    %200 = vmatprep.subr.mxu0 0.0
    %201 = vmatpush1.msra.mxu0 0.0
    %202 = vmatprep.subr.mxu0 0.0
    %203 = vmatpush1.msra.mxu0 0.0
    %204 = vmatprep.subr.mxu0 0.0
    %205 = vmatpush1.msra.mxu0 0.0
    %206 = vmatprep.subr.mxu0 0.0
    %207 = vmatpush1.msra.mxu0 0.0
    %208 = vmatprep.subr.mxu0 0.0
    %209 = vmatpush1.msra.mxu0 0.0
    %210 = vmatprep.subr.mxu0 0.0
    %211 = vmatpush1.msra.mxu0 0.0
    %212 = vmatprep.subr.mxu0 0.0
    %213 = vmatpush1.msra.mxu0 0.0
    %214 = vmatprep.subr.mxu0 0.0
    %215 = vmatpush1.msra.mxu0 0.0
    %216 = vmatprep.subr.mxu0 0.0
    %217 = vmatpush1.msra.mxu0 0.0
    %218 = vmatprep.subr.mxu0 0.0
    %219 = vmatpush1.msra.mxu0 0.0
    %220 = vmatprep.subr.mxu0 0.0
    %221 = vmatpush1.msra.mxu0 0.0
    %222 = vmatprep.subr.mxu0 0.0
    %223 = vmatpush1.msra.mxu0 0.0
    %224 = vmatprep.mubr.f32.mxu0 0.0
    %225 = vmatmul.mubr.f32.gmra.mrb[0].mxu0 %v158
    %v226 = vpop.f32.mrb[0].mxu0
    %v227 = vadd.f32 %v155, %v226
    %v228 = vpop.f32.mrb[0].mxu0
    %229 = vdwg.mxu0
    %v230 = vmax.f32 %v227, 0.0
    %v231 = vld [vmem:[%s6] sm:$0xff]
    %v232 = vld [vmem:[%s6 + $0x8] sm:$0xff]
    %v233 = vld [vmem:[%s6 + $0x10] sm:$0xff]
    %v234 = vld [vmem:[%s6 + $0x18] sm:$0xff]
    %v235 = vld [vmem:[#allocation2] sm:$0x1]
    %v237 = vlaneseq
    %v238 = vshrl.u32 %v237, 7
    %v239 = vsub.s32 0, %v238
    %v240 = vrot.slane %v235, %v239
    %v243 = vsel %vm71, %v230, 0
    %245 = vmatprep.subr.mxu0 0.0
    %246 = vmatpush1.msra.mxu0 %v231
    %247 = vmatprep.subr.mxu0 0.0
    %248 = vmatpush1.msra.mxu0 %v232
    %249 = vmatprep.subr.mxu0 0.0
    %250 = vmatpush1.msra.mxu0 %v233
    %251 = vmatprep.subr.mxu0 0.0
    %252 = vmatpush1.msra.mxu0 %v234
    %253 = vmatprep.subr.mxu0 0.0
    %254 = vmatpush1.msra.mxu0 0.0
    %255 = vmatprep.subr.mxu0 0.0
    %256 = vmatpush1.msra.mxu0 0.0
    %257 = vmatprep.subr.mxu0 0.0
    %258 = vmatpush1.msra.mxu0 0.0
    %259 = vmatprep.subr.mxu0 0.0
    %260 = vmatpush1.msra.mxu0 0.0
    %261 = vmatprep.subr.mxu0 0.0
    %262 = vmatpush1.msra.mxu0 0.0
    %263 = vmatprep.subr.mxu0 0.0
    %264 = vmatpush1.msra.mxu0 0.0
    %265 = vmatprep.subr.mxu0 0.0
    %266 = vmatpush1.msra.mxu0 0.0
    %267 = vmatprep.subr.mxu0 0.0
    %268 = vmatpush1.msra.mxu0 0.0
    %269 = vmatprep.subr.mxu0 0.0
    %270 = vmatpush1.msra.mxu0 0.0
    %271 = vmatprep.subr.mxu0 0.0
    %272 = vmatpush1.msra.mxu0 0.0
    %273 = vmatprep.subr.mxu0 0.0
    %274 = vmatpush1.msra.mxu0 0.0
    %275 = vmatprep.subr.mxu0 0.0
    %276 = vmatpush1.msra.mxu0 0.0
    %277 = vmatprep.subr.mxu0 0.0
    %278 = vmatpush1.msra.mxu0 0.0
    %279 = vmatprep.subr.mxu0 0.0
    %280 = vmatpush1.msra.mxu0 0.0
    %281 = vmatprep.subr.mxu0 0.0
    %282 = vmatpush1.msra.mxu0 0.0
    %283 = vmatprep.subr.mxu0 0.0
    %284 = vmatpush1.msra.mxu0 0.0
    %285 = vmatprep.subr.mxu0 0.0
    %286 = vmatpush1.msra.mxu0 0.0
    %287 = vmatprep.subr.mxu0 0.0
    %288 = vmatpush1.msra.mxu0 0.0
    %289 = vmatprep.subr.mxu0 0.0
    %290 = vmatpush1.msra.mxu0 0.0
    %291 = vmatprep.subr.mxu0 0.0
    %292 = vmatpush1.msra.mxu0 0.0
    %293 = vmatprep.subr.mxu0 0.0
    %294 = vmatpush1.msra.mxu0 0.0
    %295 = vmatprep.subr.mxu0 0.0
    %296 = vmatpush1.msra.mxu0 0.0
    %297 = vmatprep.subr.mxu0 0.0
    %298 = vmatpush1.msra.mxu0 0.0
    %299 = vmatprep.subr.mxu0 0.0
    %300 = vmatpush1.msra.mxu0 0.0
    %301 = vmatprep.subr.mxu0 0.0
    %302 = vmatpush1.msra.mxu0 0.0
    %303 = vmatprep.subr.mxu0 0.0
    %304 = vmatpush1.msra.mxu0 0.0
    %305 = vmatprep.subr.mxu0 0.0
    %306 = vmatpush1.msra.mxu0 0.0
    %307 = vmatprep.subr.mxu0 0.0
    %308 = vmatpush1.msra.mxu0 0.0
    %309 = vmatprep.mubr.f32.mxu0 0.0
    %310 = vmatmul.mubr.f32.gmra.mrb[0].mxu0 %v243
    %v311 = vpop.f32.mrb[0].mxu0
    %v312 = vadd.f32 %v240, %v311
    %v313 = vpop.f32.mrb[0].mxu0
    %314 = vdwg.mxu0
    %v315 = vxor.u32 %v312, 2147483648
    %v316 = vmul.f32 %v315, 1.442695
    %v317 = vpow.pop %v316
    %v318 = vadd.f32 %v317, 1.0
    %v319 = vrcp.pop %v318
    %v320 = vmul.f32 1.0, %v319
    %vm321 = vcmask 7168
    %322 = vst.msk [vmem:[%s8] sm:$0xff] %vm321, %v320
    // Predicated region
    $region42: #{tpu_custom_call.1} parent=1 // pred_check
      _
    $region43: #{tpu_custom_call.1} parent=1 // pred_check_branch
      %324 = sbr.rel (0) target = $region45
    $region44: #{tpu_custom_call.1} parent=1 // pred_region
      _
    $region45: #{tpu_custom_call.1} parent=1 // pred_fallthru
      _
    // Predicated region
    $region46: #{tpu_custom_call.1} parent=1 // pred_check
      _
    $region47: #{tpu_custom_call.1} parent=1 // pred_check_branch
      %326 = sbr.rel (0) target = $region49
    $region48: #{tpu_custom_call.1} parent=1 // pred_region
      _
    $region49: #{tpu_custom_call.1} parent=1 // pred_fallthru
      _
    %327 = vsyncpa [#allocation4], 1
    %328 = vsyncpa [#allocation6], 1

</llo_original>
